<compile_context>
chip_gen: v7x
topology: tpu7x:2x2x1
jax: 0.10.0
libtpu: 0.0.40
codegen_flags: <defaults>
</compile_context>

<pallas_src>
import functools

import numpy as np
import jax
import jax.numpy as jnp
from jax.experimental import pallas as pl
from jax.experimental.pallas import tpu as pltpu


# Hard-coded 19-class weights from the original module (use_weight=True path).
_TORCH_CLASS_WEIGHTS_19 = (0.0, 0.0, 0.0, 1.0, 1.0, 1.0, 1.0, 0.0, 0.0, 1.0,
                           0.0, 0.0, 1.0, 0.0, 1.0, 0.0, 1.0, 1.0, 1.0)


# ----------------------------------------------------------------------------
# Pallas kernel: per-pixel cross entropy with ignore_index (optionally weighted)
# ----------------------------------------------------------------------------
def _ce_kernel(ignore_index, has_weight, *refs):
    if has_weight:
        (logits_ref, tgt_ref, w_ref,
         loss_ref, wsum_ref, loss_acc, wsum_acc) = refs
    else:
        (logits_ref, tgt_ref,
         loss_ref, wsum_ref, loss_acc, wsum_acc) = refs
        w_ref = None

    t = pl.program_id(1)

    @pl.when(t == 0)
    def _():
        loss_acc[...] = jnp.zeros_like(loss_acc)
        wsum_acc[...] = jnp.zeros_like(wsum_acc)

    logits = logits_ref[...].astype(jnp.float32)          # (C, Tp)
    tgt = tgt_ref[...]                                     # (1, Tp) int32

    # log-softmax denominator over the class (sublane) axis
    m = jnp.max(logits, axis=0, keepdims=True)             # (1, Tp)
    shifted = logits - m                                    # (C, Tp)
    log_z = jnp.log(jnp.sum(jnp.exp(shifted), axis=0, keepdims=True))  # (1, Tp)

    # true-class gather via where (no one-hot float multiply)
    cls = jax.lax.broadcasted_iota(jnp.int32, logits.shape, 0)          # (C, Tp)
    is_true = cls == tgt                                                # (C, Tp)
    shifted_true = jnp.sum(jnp.where(is_true, shifted, 0.0),
                           axis=0, keepdims=True)                        # (1, Tp)
    nll = log_z - shifted_true                              # (1, Tp) = -log p[true]

    valid = tgt != ignore_index                             # (1, Tp)

    if has_weight:
        w_true = jnp.sum(jnp.where(is_true, w_ref[...].astype(jnp.float32), 0.0),
                         axis=0, keepdims=True)             # (1, Tp)
        loss_acc[...] += jnp.where(valid, w_true * nll, 0.0)
        wsum_acc[...] += jnp.where(valid, w_true, 0.0)
    else:
        loss_acc[...] += jnp.where(valid, nll, 0.0)
        wsum_acc[...] += valid.astype(jnp.float32)

    # Single cross-lane reduction + lane-dense store, once per image.
    @pl.when(t == pl.num_programs(1) - 1)
    def _():
        loss_ref[...] = jnp.full(loss_ref.shape, jnp.sum(loss_acc[...]),
                                 dtype=jnp.float32)
        wsum_ref[...] = jnp.full(wsum_ref.shape, jnp.sum(wsum_acc[...]),
                                 dtype=jnp.float32)


# ----------------------------------------------------------------------------
# Tile choice: largest pixel tile that stays well under double-buffered VMEM
# ----------------------------------------------------------------------------
def _choose_pixel_tile(hw, num_classes, max_tile=8192):
    budget_bytes = 6 * 1024 * 1024          # conservative for v5e/v7x defaults
    cap = budget_bytes // max(1, num_classes * 4 * 2)
    cap = max(128, min(max_tile, (cap // 128) * 128))
    if hw <= cap:
        return hw, hw                        # full-width tile, no pad
    t = cap
    while t >= 128:                          # prefer a divisor -> no pad at all
        if hw % t == 0:
            return t, hw
        t -= 128
    hw_pad = ((hw + cap - 1) // cap) * cap   # rare fallback: pad pixel axis
    return cap, hw_pad


# ----------------------------------------------------------------------------
# CrossEntropyLoss(ignore_index=...) over NCHW logits via the Pallas kernel
# ----------------------------------------------------------------------------
def cross_entropy_2d(pred, target, *, ignore_index=255, class_weights=None,
                     max_tile=8192):
    n, c, h, w = pred.shape
    assert target.shape == (n, h, w)
    hw = h * w

    # Free, contiguous reshapes — no HBM transpose of the logits.
    logits = pred.reshape(n, c, hw)
    tgt = target.astype(jnp.int32).reshape(n, 1, hw)

    tile_p, hw_pad = _choose_pixel_tile(hw, c, max_tile)
    if hw_pad != hw:
        logits = jnp.pad(logits, ((0, 0), (0, 0), (0, hw_pad - hw)))
        tgt = jnp.pad(tgt, ((0, 0), (0, 0), (0, hw_pad - hw)),
                      constant_values=ignore_index)

    grid = (n, hw_pad // tile_p)
    has_weight = class_weights is not None

    in_specs = [
        pl.BlockSpec((None, c, tile_p), lambda b, t: (b, 0, t)),
        pl.BlockSpec((None, 1, tile_p), lambda b, t: (b, 0, t)),
    ]
    args = [logits, tgt]
    if has_weight:
        wvec = jnp.asarray(class_weights, dtype=jnp.float32).reshape(c, 1)
        in_specs.append(pl.BlockSpec((c, 1), lambda b, t: (0, 0)))
        args.append(wvec)

    kernel = functools.partial(_ce_kernel, ignore_index, has_weight)
    loss_p, wsum_p = pl.pallas_call(
        kernel,
        out_shape=(jax.ShapeDtypeStruct((n, 1, 128), jnp.float32),
                   jax.ShapeDtypeStruct((n, 1, 128), jnp.float32)),
        grid_spec=pltpu.PrefetchScalarGridSpec(
            num_scalar_prefetch=0,
            grid=grid,
            in_specs=in_specs,
            out_specs=(
                pl.BlockSpec((1, 1, 128), lambda b, t: (b, 0, 0)),
                pl.BlockSpec((1, 1, 128), lambda b, t: (b, 0, 0)),
            ),
            scratch_shapes=[pltpu.VMEM((1, tile_p), jnp.float32),
                            pltpu.VMEM((1, tile_p), jnp.float32)],
        ),
        compiler_params=pltpu.CompilerParams(
            dimension_semantics=("parallel", "arbitrary")),
    )(*args)

    # Per-image partials -> single scalar ('mean' over kept/weighted pixels).
    return jnp.sum(loss_p[:, 0, 0]) / jnp.sum(wsum_p[:, 0, 0])


# ----------------------------------------------------------------------------
# Criterion.forward
# ----------------------------------------------------------------------------
def criterion_forward(preds, target, *, aux_weight, ignore_index=255,
                      use_weight=False, class_weights=None):
    h, w = target.shape[1], target.shape[2]
    if use_weight and class_weights is None:
        class_weights = _TORCH_CLASS_WEIGHTS_19
    if aux_weight > 0:
        main_pred, aux_pred = preds
        assert main_pred.shape[2:] == (h, w) and aux_pred.shape[2:] == (h, w)
        loss1 = cross_entropy_2d(main_pred, target, ignore_index=ignore_index)
        if use_weight:
            loss1 = loss1 + cross_entropy_2d(main_pred, target,
                                             ignore_index=ignore_index,
                                             class_weights=class_weights)
        loss2 = cross_entropy_2d(aux_pred, target, ignore_index=ignore_index)
        return loss1 + aux_weight * loss2
    assert preds.shape[2:] == (h, w)
    return cross_entropy_2d(preds, target, ignore_index=ignore_index)


# ----------------------------------------------------------------------------
# Pure-JAX reference (same math, no Pallas) for a sanity check
# ----------------------------------------------------------------------------
def _ce_reference(pred, target, *, ignore_index, class_weights=None):
    pred = pred.astype(jnp.float32)
    logp = jax.nn.log_softmax(pred, axis=1)
    valid = target != ignore_index
    safe_t = jnp.where(valid, target, 0).astype(jnp.int32)
    logp_t = jnp.take_along_axis(logp, safe_t[:, None, :, :], axis=1)[:, 0]
    if class_weights is None:
        wpix = valid.astype(jnp.float32)
    else:
        wcls = jnp.asarray(class_weights, jnp.float32)
        wpix = jnp.where(valid, wcls[safe_t], 0.0)
    return jnp.sum(-logp_t * wpix) / jnp.sum(wpix)


def _criterion_reference(preds, target, *, aux_weight, ignore_index=255,
                         use_weight=False, class_weights=None):
    if use_weight and class_weights is None:
        class_weights = _TORCH_CLASS_WEIGHTS_19
    if aux_weight > 0:
        main_pred, aux_pred = preds
        loss1 = _ce_reference(main_pred, target, ignore_index=ignore_index)
        if use_weight:
            loss1 = loss1 + _ce_reference(main_pred, target,
                                          ignore_index=ignore_index,
                                          class_weights=class_weights)
        loss2 = _ce_reference(aux_pred, target, ignore_index=ignore_index)
        return loss1 + aux_weight * loss2
    return _ce_reference(preds, target, ignore_index=ignore_index)


if __name__ == "__main__":
    key = jax.random.PRNGKey(0)
    k1, k2, k3, k4, k5, k6, k7 = jax.random.split(key, 7)

    ignore_index = 255

    # ---- test 1: aux head, use_weight=False (default config) ----
    n, c, h, w = 2, 4, 16, 16
    main_pred = jax.random.normal(k1, (n, c, h, w), dtype=jnp.float32) * 2.0
    aux_pred = jax.random.normal(k2, (n, c, h, w), dtype=jnp.float32) * 2.0
    target = jax.random.randint(k3, (n, h, w), 0, c, dtype=jnp.int32)
    target = jnp.where(jax.random.uniform(k4, (n, h, w)) < 0.1,
                       ignore_index, target)

    loss = criterion_forward((main_pred, aux_pred), target, aux_weight=0.4,
                             ignore_index=ignore_index, use_weight=False)
    loss = jax.block_until_ready(loss)
    ref = _criterion_reference((main_pred, aux_pred), target, aux_weight=0.4,
                               ignore_index=ignore_index, use_weight=False)
    ref = jax.block_until_ready(ref)
    np.testing.assert_allclose(np.asarray(loss), np.asarray(ref),
                               rtol=1e-5, atol=1e-6)

    # ---- test 2: use_weight=True with the module's 19-class weights ----
    n2, c2, h2, w2 = 1, 19, 16, 16
    main2 = jax.random.normal(k5, (n2, c2, h2, w2), dtype=jnp.float32)
    aux2 = jax.random.normal(k6, (n2, c2, h2, w2), dtype=jnp.float32)
    target2 = jax.random.randint(k7, (n2, h2, w2), 0, c2, dtype=jnp.int32)

    loss2 = criterion_forward((main2, aux2), target2, aux_weight=0.4,
                              ignore_index=ignore_index, use_weight=True)
    loss2 = jax.block_until_ready(loss2)
    ref2 = _criterion_reference((main2, aux2), target2, aux_weight=0.4,
                                ignore_index=ignore_index, use_weight=True)
    ref2 = jax.block_until_ready(ref2)
    np.testing.assert_allclose(np.asarray(loss2), np.asarray(ref2),
                               rtol=1e-5, atol=1e-6)

    print("KERNEL_OK")
</pallas_src>

<mosaic_0001>
module attributes {stable_mosaic.version = 11 : i64} {
  func.func @_ce_kernel(%arg0: i32, %arg1: i32, %arg2: memref<1x4x256xf32, #tpu.memory_space<vmem>>, %arg3: memref<1x1x256xi32, #tpu.memory_space<vmem>>, %arg4: memref<1x1x128xf32, #tpu.memory_space<vmem>>, %arg5: memref<1x1x128xf32, #tpu.memory_space<vmem>>, %arg6: memref<1x256xf32, #tpu.memory_space<vmem>>, %arg7: memref<1x256xf32, #tpu.memory_space<vmem>>) attributes {dimension_semantics = [#tpu.dimension_semantics<parallel>, #tpu.dimension_semantics<arbitrary>], iteration_bounds = array<i64: 2, 1>, scalar_prefetch = 0 : i64, scratch_operands = 2 : i64, tpu.core_type = #tpu.core_type<tc>, window_params = [{transform_indices = @transform_0, window_bounds = array<i64: 1, 4, 256>}, {transform_indices = @transform_1, window_bounds = array<i64: 1, 1, 256>}, {transform_indices = @transform_2, window_bounds = array<i64: 1, 1, 128>}, {transform_indices = @transform_3, window_bounds = array<i64: 1, 1, 128>}]} {
    %c0_i32 = arith.constant 0 : i32
    %0 = arith.cmpi eq, %arg1, %c0_i32 : i32
    %1 = arith.extui %0 : i1 to i32
    %c0_i32_0 = arith.constant 0 : i32
    %2 = arith.cmpi ne, %1, %c0_i32_0 : i32
    scf.if %2 {
      %cst_20 = arith.constant 0.000000e+00 : f32
      %38 = vector.broadcast %cst_20 : f32 to vector<1x256xf32>
      %c0_21 = arith.constant 0 : index
      %c0_22 = arith.constant 0 : index
      %39 = vector.load %arg6[%c0_21, %c0_22] : memref<1x256xf32, #tpu.memory_space<vmem>>, vector<1x256xf32>
      tpu.vector_store %arg6[%c0_21, %c0_22], %38 {strides = array<i32>} : memref<1x256xf32, #tpu.memory_space<vmem>>, vector<1x256xf32>,
      %cst_23 = arith.constant 0.000000e+00 : f32
      %40 = vector.broadcast %cst_23 : f32 to vector<1x256xf32>
      %c0_24 = arith.constant 0 : index
      %c0_25 = arith.constant 0 : index
      %41 = vector.load %arg7[%c0_24, %c0_25] : memref<1x256xf32, #tpu.memory_space<vmem>>, vector<1x256xf32>
      tpu.vector_store %arg7[%c0_24, %c0_25], %40 {strides = array<i32>} : memref<1x256xf32, #tpu.memory_space<vmem>>, vector<1x256xf32>,
    } else {
    }
    %c0 = arith.constant 0 : index
    %c0_1 = arith.constant 0 : index
    %c0_2 = arith.constant 0 : index
    %3 = vector.load %arg2[%c0, %c0_1, %c0_2] : memref<1x4x256xf32, #tpu.memory_space<vmem>>, vector<1x4x256xf32>
    %4 = vector.shape_cast %3 : vector<1x4x256xf32> to vector<4x256xf32>
    %c0_3 = arith.constant 0 : index
    %c0_4 = arith.constant 0 : index
    %c0_5 = arith.constant 0 : index
    %5 = vector.load %arg3[%c0_3, %c0_4, %c0_5] : memref<1x1x256xi32, #tpu.memory_space<vmem>>, vector<1x1x256xi32>
    %6 = vector.shape_cast %5 : vector<1x1x256xi32> to vector<1x256xi32>
    %cst = arith.constant dense<0xFF800000> : vector<256xf32>
    %7 = vector.multi_reduction <maximumf>, %4, %cst [0] : vector<4x256xf32> to vector<256xf32>
    %8 = vector.shape_cast %7 : vector<256xf32> to vector<1x256xf32>
    %9 = vector.broadcast %8 : vector<1x256xf32> to vector<4x256xf32>
    %10 = arith.subf %4, %9 : vector<4x256xf32>
    %11 = math.exp %10 : vector<4x256xf32>
    %cst_6 = arith.constant dense<0.000000e+00> : vector<256xf32>
    %12 = vector.multi_reduction <add>, %11, %cst_6 [0] : vector<4x256xf32> to vector<256xf32>
    %13 = vector.shape_cast %12 : vector<256xf32> to vector<1x256xf32>
    %14 = math.log %13 : vector<1x256xf32>
    %15 = tpu.iota {dimensions = array<i32: 0>} : vector<4x256xi32>
    %16 = vector.broadcast %6 : vector<1x256xi32> to vector<4x256xi32>
    %17 = arith.cmpi eq, %15, %16 : vector<4x256xi32>
    %cst_7 = arith.constant 0.000000e+00 : f32
    %18 = vector.broadcast %cst_7 : f32 to vector<4x256xf32>
    %19 = arith.select %17, %10, %18 : vector<4x256xi1>, vector<4x256xf32>
    %cst_8 = arith.constant dense<0.000000e+00> : vector<256xf32>
    %20 = vector.multi_reduction <add>, %19, %cst_8 [0] : vector<4x256xf32> to vector<256xf32>
    %21 = vector.shape_cast %20 : vector<256xf32> to vector<1x256xf32>
    %22 = arith.subf %14, %21 : vector<1x256xf32>
    %c255_i32 = arith.constant 255 : i32
    %23 = vector.broadcast %c255_i32 : i32 to vector<1x256xi32>
    %24 = arith.cmpi ne, %6, %23 : vector<1x256xi32>
    %c0_9 = arith.constant 0 : index
    %c0_10 = arith.constant 0 : index
    %25 = vector.load %arg6[%c0_9, %c0_10] : memref<1x256xf32, #tpu.memory_space<vmem>>, vector<1x256xf32>
    %cst_11 = arith.constant 0.000000e+00 : f32
    %26 = vector.broadcast %cst_11 : f32 to vector<1x256xf32>
    %27 = arith.select %24, %22, %26 : vector<1x256xi1>, vector<1x256xf32>
    %28 = arith.addf %25, %27 : vector<1x256xf32>
    %c0_12 = arith.constant 0 : index
    %c0_13 = arith.constant 0 : index
    %29 = vector.load %arg6[%c0_12, %c0_13] : memref<1x256xf32, #tpu.memory_space<vmem>>, vector<1x256xf32>
    tpu.vector_store %arg6[%c0_12, %c0_13], %28 {strides = array<i32>} : memref<1x256xf32, #tpu.memory_space<vmem>>, vector<1x256xf32>,
    %c0_14 = arith.constant 0 : index
    %c0_15 = arith.constant 0 : index
    %30 = vector.load %arg7[%c0_14, %c0_15] : memref<1x256xf32, #tpu.memory_space<vmem>>, vector<1x256xf32>
    %31 = arith.extui %24 : vector<1x256xi1> to vector<1x256xi32>
    %32 = arith.sitofp %31 : vector<1x256xi32> to vector<1x256xf32>
    %33 = arith.addf %30, %32 : vector<1x256xf32>
    %c0_16 = arith.constant 0 : index
    %c0_17 = arith.constant 0 : index
    %34 = vector.load %arg7[%c0_16, %c0_17] : memref<1x256xf32, #tpu.memory_space<vmem>>, vector<1x256xf32>
    tpu.vector_store %arg7[%c0_16, %c0_17], %33 {strides = array<i32>} : memref<1x256xf32, #tpu.memory_space<vmem>>, vector<1x256xf32>,
    %c0_i32_18 = arith.constant 0 : i32
    %35 = arith.cmpi eq, %arg1, %c0_i32_18 : i32
    %36 = arith.extui %35 : i1 to i32
    %c0_i32_19 = arith.constant 0 : i32
    %37 = arith.cmpi ne, %36, %c0_i32_19 : i32
    scf.if %37 {
      %c0_20 = arith.constant 0 : index
      %c0_21 = arith.constant 0 : index
      %38 = vector.load %arg6[%c0_20, %c0_21] : memref<1x256xf32, #tpu.memory_space<vmem>>, vector<1x256xf32>
      %39 = vector.shape_cast %38 : vector<1x256xf32> to vector<1x1x256xf32>
      %cst_22 = arith.constant dense<0.000000e+00> : vector<1xf32>
      %40 = vector.multi_reduction <add>, %39, %cst_22 [1, 2] : vector<1x1x256xf32> to vector<1xf32>
      %41 = vector.shape_cast %40 : vector<1xf32> to vector<1x1x1xf32>
      %42 = vector.extract %41[0, 0, 0] : f32 from vector<1x1x1xf32>
      %43 = vector.broadcast %42 : f32 to vector<1x1x128xf32>
      %c0_23 = arith.constant 0 : index
      %c0_24 = arith.constant 0 : index
      %c0_25 = arith.constant 0 : index
      %44 = vector.load %arg4[%c0_23, %c0_24, %c0_25] : memref<1x1x128xf32, #tpu.memory_space<vmem>>, vector<1x1x128xf32>
      tpu.vector_store %arg4[%c0_23, %c0_24, %c0_25], %43 {strides = array<i32>} : memref<1x1x128xf32, #tpu.memory_space<vmem>>, vector<1x1x128xf32>,
      %c0_26 = arith.constant 0 : index
      %c0_27 = arith.constant 0 : index
      %45 = vector.load %arg7[%c0_26, %c0_27] : memref<1x256xf32, #tpu.memory_space<vmem>>, vector<1x256xf32>
      %46 = vector.shape_cast %45 : vector<1x256xf32> to vector<1x1x256xf32>
      %cst_28 = arith.constant dense<0.000000e+00> : vector<1xf32>
      %47 = vector.multi_reduction <add>, %46, %cst_28 [1, 2] : vector<1x1x256xf32> to vector<1xf32>
      %48 = vector.shape_cast %47 : vector<1xf32> to vector<1x1x1xf32>
      %49 = vector.extract %48[0, 0, 0] : f32 from vector<1x1x1xf32>
      %50 = vector.broadcast %49 : f32 to vector<1x1x128xf32>
      %c0_29 = arith.constant 0 : index
      %c0_30 = arith.constant 0 : index
      %c0_31 = arith.constant 0 : index
      %51 = vector.load %arg5[%c0_29, %c0_30, %c0_31] : memref<1x1x128xf32, #tpu.memory_space<vmem>>, vector<1x1x128xf32>
      tpu.vector_store %arg5[%c0_29, %c0_30, %c0_31], %50 {strides = array<i32>} : memref<1x1x128xf32, #tpu.memory_space<vmem>>, vector<1x1x128xf32>,
    } else {
    }
    return
  }
  func.func @transform_0(%arg0: i32, %arg1: i32) -> (i32, i32, i32) {
    %c0_i32 = arith.constant 0 : i32
    %c0_i32_0 = arith.constant 0 : i32
    return %arg0, %c0_i32, %arg1 : i32, i32, i32
  }
  func.func @transform_1(%arg0: i32, %arg1: i32) -> (i32, i32, i32) {
    %c0_i32 = arith.constant 0 : i32
    %c0_i32_0 = arith.constant 0 : i32
    return %arg0, %c0_i32, %arg1 : i32, i32, i32
  }
  func.func @transform_2(%arg0: i32, %arg1: i32) -> (i32, i32, i32) {
    %c0_i32 = arith.constant 0 : i32
    %c0_i32_0 = arith.constant 0 : i32
    %c0_i32_1 = arith.constant 0 : i32
    return %arg0, %c0_i32, %c0_i32_0 : i32, i32, i32
  }
  func.func @transform_3(%arg0: i32, %arg1: i32) -> (i32, i32, i32) {
    %c0_i32 = arith.constant 0 : i32
    %c0_i32_0 = arith.constant 0 : i32
    %c0_i32_1 = arith.constant 0 : i32
    return %arg0, %c0_i32, %c0_i32_0 : i32, i32, i32
  }
}

</mosaic_0001>

<llo_original>
// kernel: tpu_custom_call.1
$region0: #{tpu_custom_call.1}
  #allocation0 [shape = 'u32[]', space=smem, size = 0x4, offset = 0x4, fixed_abs, tag = 'smem constant byte address 0x4 - core index']
  #allocation1 [shape = 'u32[144,128]{1,0:T(1,128)}', space=vmem, size = 0x12000, scoped, tag = 'internal scratch']
  #allocation2 [shape = 'f32[1,256]{1,0:T(1,128)}', space=vmem, size = 0x400, scoped, tag = 'scratch operand']
  #allocation3 [shape = 'f32[1,256]{1,0:T(1,128)}', space=vmem, size = 0x400, scoped, tag = 'scratch operand']
  %s0 = inlined_call_operand.hbm [shape: f32[2,4,256], index: 0, kind: input, shape index: {}]
  %s1 = inlined_call_operand.hbm [shape: s32[2,1,256], index: 1, kind: input, shape index: {}]
  %s2 = inlined_call_operand.hbm [shape: f32[2,1,128], index: 2, kind: output, shape index: {0}]
  %s3 = inlined_call_operand.hbm [shape: f32[2,1,128], index: 3, kind: output, shape index: {1}]
  %4 = xla_tuple %s2, %s3
  %s5 = sld [smem:[#allocation0]]
  $region65: #{tpu_custom_call.1} parent=0
    _
  %s7 = ssub.s32 1, %s5
  %s8 = scalar_select 0, %s7, %s5
  $region1: #{tpu_custom_call.1} parent=0
    #allocation4 [shape = 'u8[8192]{0}', space=vmem, size = 0x2000, scoped, tag = 'input window, operand 0']
    #allocation5 [shape = 's32[2]{0}', space=sflag, size = 0x8, scoped, tag = 'scoped memory for tpu_custom_call.1']
    #allocation6 [shape = 's32[2]{0}', space=sflag, size = 0x8, scoped, tag = 'scoped memory for tpu_custom_call.1']
    #allocation7 [shape = 'u8[2048]{0}', space=vmem, size = 0x800, scoped, tag = 'input window, operand 1']
    #allocation8 [shape = 's32[2]{0}', space=sflag, size = 0x8, scoped, tag = 'scoped memory for tpu_custom_call.1']
    #allocation9 [shape = 'u8[1024]{0}', space=vmem, size = 0x400, scoped, tag = 'output window, operand 0']
    #allocation10 [shape = 'u8[1024]{0}', space=vmem, size = 0x400, scoped, tag = 'output window, operand 1']
    #allocation11 [shape = 's32[2]{0}', space=sflag, size = 0x8, scoped, tag = 'scoped memory for tpu_custom_call.1']
    %9 = vsyncpa [#allocation5], 0
    %s10 = scalar_lea.sflag [#allocation5], 1
    %11 = vsyncpa %s10, 0
    %12 = vsyncpa [#allocation8], 0
    %s13 = scalar_lea.sflag [#allocation8], 1
    %14 = vsyncpa %s13, 0
    %15 = vsyncpa [#allocation6], 0
    %s16 = scalar_lea.sflag [#allocation6], 1
    %17 = vsyncpa %s16, 0
    %18 = vsyncpa [#allocation11], 0
    %s19 = scalar_lea.sflag [#allocation11], 1
    %20 = vsyncpa %s19, 0
    loop: start=0, step=1, limit=4
    $region2: #{tpu_custom_call.1} parent=1 // loop_pre_header
      _
    $region3: #{tpu_custom_call.1} parent=1 // loop_header
      %s22 = sphi 0, %s26
      %p23 = scmp.ge.s32.totalorder %s22, 4
      %s29 = sphi 0, %s41
      %s30 = sphi 0, %s37
      %s31 = sphi 0, %s29
      %s32 = sphi 0, %s30
      %s33 = sphi 0, %s31
      %s34 = sphi 0, %s32
      %s46 = sphi 0, %s48
      %s49 = sphi 0, %s46
      %s50 = sphi 0, %s49
      %s66 = sphi 0, %s50
      %s74 = sphi 0, %s76
      %s77 = sphi 0, %s74
      %s78 = sphi 0, %s77
      %s94 = sphi 0, %s78
      %s100 = sphi 0, %s102
      %s103 = sphi 0, %s100
      %s104 = sphi 0, %s103
      %s120 = sphi 0, %s104
      %s126 = sphi 0, %s128
      %s129 = sphi 0, %s126
      %s130 = sphi 0, %s129
      %s146 = sphi 0, %s130
    $region4: #{tpu_custom_call.1} parent=1 // loop_header_branch
      %25 = sbr.rel (%p23) target = $region8
    $region5: #{tpu_custom_call.1} parent=1 // loop_body
      %s27 = ssub.s32 %s22, 1
      %s28 = ssub.s32 %s22, 2
      %s35 = sadd.s32 1, %s30
      %p36 = scmp.ge.s32.totalorder %s35, 1
      %s37 = scalar_select %p36, 0, %s35
      %s38 = sadd.s32 1, %s29
      %s39 = scalar_select %p36, %s38, %s29
      %p40 = scmp.ge.s32.totalorder %s39, 2
      %s41 = scalar_select %p40, 0, %s39
      %s42 = ssub.s32 %s29, %s41
      %s43 = ssub.s32 %s30, %s37
      %s44 = sor.u32 %s42, %s43
      %p45 = scmp.eq.s32.totalorder %s44, 0
      %s47 = sadd.s32 %s46, 1
      %s48 = scalar_select %p45, %s46, %s47
      %p51 = pneg %p45
      %p52 = scmp.eq.s32.totalorder %s22, 1
      %p53 = por %p51, %p52
      %p54 = scmp.ne.s32.totalorder %s46, %s49
      %p55 = scmp.eq.s32.totalorder %s22, 0
      %p56 = por %p54, %p55
      %p57 = scmp.ne.s32.totalorder %s46, %s49
      %p58 = scmp.eq.s32.totalorder %s27, 1
      %p59 = por %p57, %p58
      %p60 = scmp.ne.s32.totalorder %s49, %s50
      %p61 = scmp.eq.s32.totalorder %s27, 0
      %p62 = por %p60, %p61
      %p63 = scmp.ne.s32.totalorder %s49, %s50
      %p64 = scmp.eq.s32.totalorder %s28, 1
      %p65 = por %p63, %p64
      %p67 = scmp.ne.s32.totalorder %s50, %s66
      %p68 = scmp.eq.s32.totalorder %s28, 0
      %p69 = por %p67, %p68
      %s70 = ssub.s32 %s29, %s41
      %s71 = ssub.s32 %s30, %s37
      %s72 = sor.u32 %s70, %s71
      %p73 = scmp.eq.s32.totalorder %s72, 0
      %s75 = sadd.s32 %s74, 1
      %s76 = scalar_select %p73, %s74, %s75
      %p79 = pneg %p73
      %p80 = scmp.eq.s32.totalorder %s22, 1
      %p81 = por %p79, %p80
      %p82 = scmp.ne.s32.totalorder %s74, %s77
      %p83 = scmp.eq.s32.totalorder %s22, 0
      %p84 = por %p82, %p83
      %p85 = scmp.ne.s32.totalorder %s74, %s77
      %p86 = scmp.eq.s32.totalorder %s27, 1
      %p87 = por %p85, %p86
      %p88 = scmp.ne.s32.totalorder %s77, %s78
      %p89 = scmp.eq.s32.totalorder %s27, 0
      %p90 = por %p88, %p89
      %p91 = scmp.ne.s32.totalorder %s77, %s78
      %p92 = scmp.eq.s32.totalorder %s28, 1
      %p93 = por %p91, %p92
      %p95 = scmp.ne.s32.totalorder %s78, %s94
      %p96 = scmp.eq.s32.totalorder %s28, 0
      %p97 = por %p95, %p96
      %s98 = ssub.s32 %s29, %s41
      %p99 = scmp.eq.s32.totalorder %s98, 0
      %s101 = sadd.s32 %s100, 1
      %s102 = scalar_select %p99, %s100, %s101
      %p105 = pneg %p99
      %p106 = scmp.eq.s32.totalorder %s22, 1
      %p107 = por %p105, %p106
      %p108 = scmp.ne.s32.totalorder %s100, %s103
      %p109 = scmp.eq.s32.totalorder %s22, 0
      %p110 = por %p108, %p109
      %p111 = scmp.ne.s32.totalorder %s100, %s103
      %p112 = scmp.eq.s32.totalorder %s27, 1
      %p113 = por %p111, %p112
      %p114 = scmp.ne.s32.totalorder %s103, %s104
      %p115 = scmp.eq.s32.totalorder %s27, 0
      %p116 = por %p114, %p115
      %p117 = scmp.ne.s32.totalorder %s103, %s104
      %p118 = scmp.eq.s32.totalorder %s28, 1
      %p119 = por %p117, %p118
      %p121 = scmp.ne.s32.totalorder %s104, %s120
      %p122 = scmp.eq.s32.totalorder %s28, 0
      %p123 = por %p121, %p122
      %s124 = ssub.s32 %s29, %s41
      %p125 = scmp.eq.s32.totalorder %s124, 0
      %s127 = sadd.s32 %s126, 1
      %s128 = scalar_select %p125, %s126, %s127
      %p131 = pneg %p125
      %p132 = scmp.eq.s32.totalorder %s22, 1
      %p133 = por %p131, %p132
      %p134 = scmp.ne.s32.totalorder %s126, %s129
      %p135 = scmp.eq.s32.totalorder %s22, 0
      %p136 = por %p134, %p135
      %p137 = scmp.ne.s32.totalorder %s126, %s129
      %p138 = scmp.eq.s32.totalorder %s27, 1
      %p139 = por %p137, %p138
      %p140 = scmp.ne.s32.totalorder %s129, %s130
      %p141 = scmp.eq.s32.totalorder %s27, 0
      %p142 = por %p140, %p141
      %p143 = scmp.ne.s32.totalorder %s129, %s130
      %p144 = scmp.eq.s32.totalorder %s28, 1
      %p145 = por %p143, %p144
      %p147 = scmp.ne.s32.totalorder %s130, %s146
      %p148 = scmp.eq.s32.totalorder %s28, 0
      %p149 = por %p147, %p148
      %p150 = scmp.le.s32.totalorder 1, %s22
      %p151 = scmp.lt.s32.totalorder %s22, 3
      %p152 = pnand %p150, %p151
      %p153 = pneg %p152
      // Predicated region
      $region9: #{tpu_custom_call.1} parent=5 // pred_check
        _
      $region10: #{tpu_custom_call.1} parent=5 // pred_check_branch
        %155 = sbr.rel (%p152) target = $region12
      $region11: #{tpu_custom_call.1} parent=5 // pred_region
        %s156 = ssub.s32 %s22, 1
      $region12: #{tpu_custom_call.1} parent=5 // pred_fallthru
        _
      %p157 = scmp.lt.s32.totalorder %s22, 2
      // Predicated region
      $region13: #{tpu_custom_call.1} parent=5 // pred_check
        %p158 = pneg %p157
      $region14: #{tpu_custom_call.1} parent=5 // pred_check_branch
        %160 = sbr.rel (%p158) target = $region16
      $region15: #{tpu_custom_call.1} parent=5 // pred_region
        // Predicated region
        $region17: #{tpu_custom_call.1} parent=15 // pred_check
          %p161 = pneg %p56
        $region18: #{tpu_custom_call.1} parent=15 // pred_check_branch
          %163 = sbr.rel (%p161) target = $region20
        $region19: #{tpu_custom_call.1} parent=15 // pred_region
          %s164 = sand.u32 %s46, 1
          %s165 = scalar_lea.sflag [#allocation5], %s164
          %s166 = sand.u32 %s46, 1
          %s167 = smul.addr %s166, 8
          %s168 = scalar_lea.vmem [#allocation4], %s167
          %s169 = smul.u32 2, %s30
          %s171 = ssub.s32 128, 128
          %172 = vsyncadd %s165, %s171
          %s173 = smul.addr %s29, 2
          %s174 = sadd.s32 %s169, %s173
          %s175 = smul.addr %s174, 64
          %s176 = scalar_lea.hbm %s0, %s175
          %s178 = sshll.u32 %s168, 4
          %s179 = int_to_ptr.vmem [resolvable:$true] %s178
          %181 = dma.hbm_to_vmem [thread:$0]  %s176, 128, %s179, %s165
        $region20: #{tpu_custom_call.1} parent=15 // pred_fallthru
          _
        // Predicated region
        $region21: #{tpu_custom_call.1} parent=15 // pred_check
          %p182 = pneg %p84
        $region22: #{tpu_custom_call.1} parent=15 // pred_check_branch
          %184 = sbr.rel (%p182) target = $region24
        $region23: #{tpu_custom_call.1} parent=15 // pred_region
          %s185 = sand.u32 %s74, 1
          %s186 = scalar_lea.sflag [#allocation8], %s185
          %s187 = sand.u32 %s74, 1
          %s188 = smul.addr %s187, 2
          %s189 = scalar_lea.vmem [#allocation7], %s188
          %s190 = smul.u32 2, %s30
          %s192 = ssub.s32 32, 32
          %193 = vsyncadd %s186, %s192
          %s194 = smul.addr %s29, 2
          %s195 = sadd.s32 %s190, %s194
          %s196 = smul.addr %s195, 16
          %s197 = scalar_lea.hbm %s1, %s196
          %s199 = sshll.u32 %s189, 4
          %s200 = int_to_ptr.vmem [resolvable:$true] %s199
          %202 = dma.hbm_to_vmem [thread:$0]  %s197, 32, %s200, %s186
        $region24: #{tpu_custom_call.1} parent=15 // pred_fallthru
          _
      $region16: #{tpu_custom_call.1} parent=5 // pred_fallthru
        _
      %p203 = scmp.le.s32.totalorder 1, %s22
      %p204 = scmp.lt.s32.totalorder %s22, 3
      %p205 = pnand %p203, %p204
      %p206 = pneg %p205
      // Predicated region
      $region25: #{tpu_custom_call.1} parent=5 // pred_check
        _
      $region26: #{tpu_custom_call.1} parent=5 // pred_check_branch
        %208 = sbr.rel (%p205) target = $region28
      $region27: #{tpu_custom_call.1} parent=5 // pred_region
        %s209 = ssub.s32 %s22, 1
        %s210 = sand.u32 %s49, 1
        %s211 = scalar_lea.sflag [#allocation5], %s210
        %s212 = sand.u32 %s49, 1
        %s213 = smul.addr %s212, 8
        %s214 = scalar_lea.vmem [#allocation4], %s213
        // Predicated region
        $region29: #{tpu_custom_call.1} parent=27 // pred_check
          %p215 = pneg %p62
        $region30: #{tpu_custom_call.1} parent=27 // pred_check_branch
          %217 = sbr.rel (%p215) target = $region32
        $region31: #{tpu_custom_call.1} parent=27 // pred_region
          %218 = dma.done %s211, 128
        $region32: #{tpu_custom_call.1} parent=27 // pred_fallthru
          _
        %s219 = sand.u32 %s77, 1
        %s220 = scalar_lea.sflag [#allocation8], %s219
        %s221 = sand.u32 %s77, 1
        %s222 = smul.addr %s221, 2
        %s223 = scalar_lea.vmem [#allocation7], %s222
        // Predicated region
        $region33: #{tpu_custom_call.1} parent=27 // pred_check
          %p224 = pneg %p90
        $region34: #{tpu_custom_call.1} parent=27 // pred_check_branch
          %226 = sbr.rel (%p224) target = $region36
        $region35: #{tpu_custom_call.1} parent=27 // pred_region
          %227 = dma.done %s220, 32
        $region36: #{tpu_custom_call.1} parent=27 // pred_fallthru
          _
        %s228 = sand.u32 %s49, 1
        %s229 = scalar_lea.sflag [#allocation5], %s228
        %s230 = sand.u32 %s49, 1
        %s231 = smul.addr %s230, 8
        %s232 = scalar_lea.vmem [#allocation4], %s231
        %p233 = pneg %p62
        %p234 = pneg %p59
        %s235 = sand.u32 %s77, 1
        %s236 = scalar_lea.sflag [#allocation8], %s235
        %s237 = sand.u32 %s77, 1
        %s238 = smul.addr %s237, 2
        %s239 = scalar_lea.vmem [#allocation7], %s238
        %p240 = pneg %p90
        %p241 = pneg %p87
        %p242 = pneg %p116
        %p243 = pneg %p113
        %s244 = sand.u32 %s103, 1
        %s245 = scalar_lea.sflag [#allocation6], %s244
        %s246 = sand.u32 %s103, 1
        %s247 = scalar_lea.vmem [#allocation9], %s246
        %p248 = pneg %p142
        %p249 = pneg %p139
        %s250 = sand.u32 %s129, 1
        %s251 = scalar_lea.sflag [#allocation11], %s250
        %s252 = sand.u32 %s129, 1
        %s253 = scalar_lea.vmem [#allocation10], %s252
        %s254 = smul.u32 2, %s32
        %s255 = smul.u32 2, %s32
        %p256 = scmp.eq.s32.totalorder %s32, 0
        // Predicated region
        $region37: #{tpu_custom_call.1} parent=27 // pred_check
          %p257 = pneg %p256
        $region38: #{tpu_custom_call.1} parent=27 // pred_check_branch
          %259 = sbr.rel (%p257) target = $region40
        $region39: #{tpu_custom_call.1} parent=27 // pred_region
          %v260 = vlaneseq
          %vm261 = vcmp.ge.s32.totalorder %v260, 0
          %vm262 = vcmp.lt.s32.totalorder %v260, 256
          %vm263 = vmand %vm261, %vm262
          %264 = vst.msk [vmem:[#allocation2] sm:$0x3] %vm263, 0.0
          %265 = vst.msk [vmem:[#allocation3] sm:$0x3] %vm263, 0.0
        $region40: #{tpu_custom_call.1} parent=27 // pred_fallthru
          _
        %v266 = vld [vmem:[%s214] sm:$0xff]
        %v267 = vld [vmem:[%s223] sm:$0x3]
        %v269 = vcombine.high %v266, %v266
        %vm271 = vcmask 1043456
        %v272 = vsel %vm271, %v266, -inf
        %v273 = vrot.slane %v272, 4
        %v274 = vmax.f32 %v272, %v273
        %v275 = vrot.slane %v274, 2
        %v276 = vmax.f32 %v274, %v275
        %v277 = vrot.slane %v276, 1
        %v278 = vmax.f32 %v276, %v277
        %v279 = vsel %vm271, %v269, -inf
        %v280 = vrot.slane %v279, 4
        %v281 = vmax.f32 %v279, %v280
        %v282 = vrot.slane %v281, 2
        %v283 = vmax.f32 %v281, %v282
        %v284 = vrot.slane %v283, 1
        %v285 = vmax.f32 %v283, %v284
        %v288 = vcombine.low %v278, %v285
        %v290 = vsub.f32 %v266, %v288
        %v291 = vmul.f32 %v290, 1.442695
        %v292 = vpow.pop %v291
        %v294 = vcombine.high %v292, %v292
        %v296 = vsel %vm271, %v292, 0.0
        %v297 = vrot.slane %v296, 4
        %v298 = vadd.f32 %v296, %v297
        %v299 = vrot.slane %v298, 2
        %v300 = vadd.f32 %v298, %v299
        %v301 = vrot.slane %v300, 1
        %v302 = vadd.f32 %v300, %v301
        %v303 = vsel %vm271, %v294, 0.0
        %v304 = vrot.slane %v303, 4
        %v305 = vadd.f32 %v303, %v304
        %v306 = vrot.slane %v305, 2
        %v307 = vadd.f32 %v305, %v306
        %v308 = vrot.slane %v307, 1
        %v309 = vadd.f32 %v307, %v308
        %v310 = vlog2.pop %v302
        %v311 = vmul.f32 %v310, 0.6931472
        %v312 = vlog2.pop %v309
        %v313 = vmul.f32 %v312, 0.6931472
        %v314 = vlaneseq
        %v315 = vshrl.u32 %v314, 7
        %v316 = vlaneseq
        %v317 = vshrl.u32 %v316, 7
        %v318 = vsub.s32 0, %v317
        %v319 = vrot.slane %v267, %v318
        %v320 = vlaneseq
        %v321 = vshrl.u32 %v320, 7
        %v322 = vsub.s32 1, %v321
        %v323 = vrot.slane %v267, %v322
        %vm324 = vcmp.eq.s32.totalorder %v315, %v319
        %vm325 = vcmp.eq.s32.totalorder %v315, %v323
        %v327 = vcombine.high %v290, %v290
        %v329 = vsel %vm324, %v290, 0.0
        %v330 = vsel %vm325, %v327, 0.0
        %v331 = vsel %vm271, %v329, 0.0
        %v332 = vrot.slane %v331, 4
        %v333 = vadd.f32 %v331, %v332
        %v334 = vrot.slane %v333, 2
        %v335 = vadd.f32 %v333, %v334
        %v336 = vrot.slane %v335, 1
        %v337 = vadd.f32 %v335, %v336
        %v338 = vsel %vm271, %v330, 0.0
        %v339 = vrot.slane %v338, 4
        %v340 = vadd.f32 %v338, %v339
        %v341 = vrot.slane %v340, 2
        %v342 = vadd.f32 %v340, %v341
        %v343 = vrot.slane %v342, 1
        %v344 = vadd.f32 %v342, %v343
        %v345 = vsub.f32 %v311, %v337
        %v346 = vsub.f32 %v313, %v344
        %vm347 = vcmp.ne.s32.totalorder %v267, 255
        %v348 = vld [vmem:[#allocation2] sm:$0x3]
        %v351 = vcombine.low %v345, %v346
        %v353 = vunpack.c.l.s4 1966171168
        %v354 = vunpack.c.0.s8 %v353
        %v355 = vlaneseq
        %v356 = vshrl.u32 %v355, 7
        %v357 = vsub.s32 %v354, %v356
        %v358 = vrot.slane %v351, %v357
        %v360 = vunpack.c.l.s4 1966171168
        %v361 = vunpack.c.0.s8 %v360
        %v362 = vlaneseq
        %v363 = vshrl.u32 %v362, 7
        %v364 = vsub.s32 %v361, %v363
        %v365 = vrot.slane %v358, %v364
        %v367 = vsel %vm347, %v365, 0.0
        %v368 = vadd.f32 %v348, %v367
        %v369 = vlaneseq
        %vm370 = vcmp.ge.s32.totalorder %v369, 0
        %vm371 = vcmp.lt.s32.totalorder %v369, 256
        %vm372 = vmand %vm370, %vm371
        %373 = vst.msk [vmem:[#allocation2] sm:$0x3] %vm372, %v368
        %v374 = vld [vmem:[#allocation3] sm:$0x3]
        %v375 = vsel %vm347, 1, 0
        %v376 = vcvt.s32.f32 %v375
        %v377 = vadd.f32 %v374, %v376
        %378 = vst.msk [vmem:[#allocation3] sm:$0x3] %vm372, %v377
        // Predicated region
        $region41: #{tpu_custom_call.1} parent=27 // pred_check
          %p379 = pneg %p256
        $region42: #{tpu_custom_call.1} parent=27 // pred_check_branch
          %381 = sbr.rel (%p379) target = $region44
        $region43: #{tpu_custom_call.1} parent=27 // pred_region
          %v382 = vld [vmem:[#allocation2] sm:$0x3]
          %v384 = vlaneseq
          %v385 = vshrl.u32 %v384, 7
          %v386 = vsub.s32 0, %v385
          %v387 = vrot.slane %v382, %v386
          %v388 = vlaneseq
          %v389 = vshrl.u32 %v388, 7
          %v390 = vsub.s32 1, %v389
          %v391 = vrot.slane %v382, %v390
          %vm394 = vcmask 1040384
          %v395 = vsel %vm394, %v387, 0.0
          %v396 = vsel %vm394, %v391, 0.0
          %v397 = vadd.f32 %v395, %v396
          %398 = vadd.xlane.f32.xlu0 %v397
          %v399 = vpop.xlane.xlu0 %398
          %v400 = vrot.slane %v399, 4
          %v401 = vadd.f32 %v399, %v400
          %v402 = vrot.slane %v401, 2
          %v403 = vadd.f32 %v401, %v402
          %v404 = vrot.slane %v403, 1
          %v405 = vadd.f32 %v403, %v404
          %s406 = vtos %v405
          %v407 = vstv %s406
          %408 = vst [vmem:[%s247] sm:$0x1] %v407
          %v409 = vld [vmem:[#allocation3] sm:$0x3]
          %v411 = vlaneseq
          %v412 = vshrl.u32 %v411, 7
          %v413 = vsub.s32 0, %v412
          %v414 = vrot.slane %v409, %v413
          %v415 = vlaneseq
          %v416 = vshrl.u32 %v415, 7
          %v417 = vsub.s32 1, %v416
          %v418 = vrot.slane %v409, %v417
          %v421 = vsel %vm394, %v414, 0.0
          %v422 = vsel %vm394, %v418, 0.0
          %v423 = vadd.f32 %v421, %v422
          %424 = vadd.xlane.f32.xlu0 %v423
          %v425 = vpop.xlane.xlu0 %424
          %v426 = vrot.slane %v425, 4
          %v427 = vadd.f32 %v425, %v426
          %v428 = vrot.slane %v427, 2
          %v429 = vadd.f32 %v427, %v428
          %v430 = vrot.slane %v429, 1
          %v431 = vadd.f32 %v429, %v430
          %s432 = vtos %v431
          %v433 = vstv %s432
          %434 = vst [vmem:[%s253] sm:$0x1] %v433
        $region44: #{tpu_custom_call.1} parent=27 // pred_fallthru
          _
        %s435 = sand.u32 %s103, 1
        %s436 = scalar_lea.sflag [#allocation6], %s435
        %s437 = sand.u32 %s103, 1
        %s438 = scalar_lea.vmem [#allocation9], %s437
        %s439 = sand.u32 %s129, 1
        %s440 = scalar_lea.sflag [#allocation11], %s439
        %s441 = sand.u32 %s129, 1
        %s442 = scalar_lea.vmem [#allocation10], %s441
        // Predicated region
        $region45: #{tpu_custom_call.1} parent=27 // pred_check
          %p443 = pneg %p113
        $region46: #{tpu_custom_call.1} parent=27 // pred_check_branch
          %445 = sbr.rel (%p443) target = $region48
        $region47: #{tpu_custom_call.1} parent=27 // pred_region
          %s447 = ssub.s32 16, 16
          %448 = vsyncadd %s436, %s447
          %s449 = smul.addr %s31, 16
          %s450 = scalar_lea.hbm %s2, %s449
          %s452 = sshll.u32 %s438, 4
          %s453 = int_to_ptr.vmem [resolvable:$true] %s452
          %455 = dma.vmem_to_hbm [thread:$0]  %s453, 16, %s450, %s436
        $region48: #{tpu_custom_call.1} parent=27 // pred_fallthru
          _
        // Predicated region
        $region49: #{tpu_custom_call.1} parent=27 // pred_check
          %p456 = pneg %p139
        $region50: #{tpu_custom_call.1} parent=27 // pred_check_branch
          %458 = sbr.rel (%p456) target = $region52
        $region51: #{tpu_custom_call.1} parent=27 // pred_region
          %s460 = ssub.s32 16, 16
          %461 = vsyncadd %s440, %s460
          %s462 = smul.addr %s31, 16
          %s463 = scalar_lea.hbm %s3, %s462
          %s465 = sshll.u32 %s442, 4
          %s466 = int_to_ptr.vmem [resolvable:$true] %s465
          %468 = dma.vmem_to_hbm [thread:$0]  %s466, 16, %s463, %s440
        $region52: #{tpu_custom_call.1} parent=27 // pred_fallthru
          _
      $region28: #{tpu_custom_call.1} parent=5 // pred_fallthru
        _
      %p469 = scmp.le.s32.totalorder 2, %s22
      // Predicated region
      $region53: #{tpu_custom_call.1} parent=5 // pred_check
        %p470 = pneg %p469
      $region54: #{tpu_custom_call.1} parent=5 // pred_check_branch
        %472 = sbr.rel (%p470) target = $region56
      $region55: #{tpu_custom_call.1} parent=5 // pred_region
        %s473 = ssub.s32 %s22, 2
        // Predicated region
        $region57: #{tpu_custom_call.1} parent=55 // pred_check
          %p474 = pneg %p119
        $region58: #{tpu_custom_call.1} parent=55 // pred_check_branch
          %476 = sbr.rel (%p474) target = $region60
        $region59: #{tpu_custom_call.1} parent=55 // pred_region
          %s477 = sand.u32 %s104, 1
          %s478 = scalar_lea.sflag [#allocation6], %s477
          %s479 = sand.u32 %s104, 1
          %s480 = scalar_lea.vmem [#allocation9], %s479
          %481 = dma.done %s478, 16
        $region60: #{tpu_custom_call.1} parent=55 // pred_fallthru
          _
        // Predicated region
        $region61: #{tpu_custom_call.1} parent=55 // pred_check
          %p482 = pneg %p145
        $region62: #{tpu_custom_call.1} parent=55 // pred_check_branch
          %484 = sbr.rel (%p482) target = $region64
        $region63: #{tpu_custom_call.1} parent=55 // pred_region
          %s485 = sand.u32 %s130, 1
          %s486 = scalar_lea.sflag [#allocation11], %s485
          %s487 = sand.u32 %s130, 1
          %s488 = scalar_lea.vmem [#allocation10], %s487
          %489 = dma.done %s486, 16
        $region64: #{tpu_custom_call.1} parent=55 // pred_fallthru
          _
      $region56: #{tpu_custom_call.1} parent=5 // pred_fallthru
        _
    $region6: #{tpu_custom_call.1} parent=1 // loop_footer
      %s26 = sadd.s32 1, %s22
    $region7: #{tpu_custom_call.1} parent=1 // loop_footer_branch
      %21 = sbr.rel target = $region3
    $region8: #{tpu_custom_call.1} parent=1 // loop_exit
      _
    %490 = vsyncpa [#allocation5], 1
    %s491 = scalar_lea.sflag [#allocation5], 1
    %492 = vsyncpa %s491, 1
    %493 = vsyncpa [#allocation8], 1
    %s494 = scalar_lea.sflag [#allocation8], 1
    %495 = vsyncpa %s494, 1
    %496 = vsyncpa [#allocation6], 1
    %s497 = scalar_lea.sflag [#allocation6], 1
    %498 = vsyncpa %s497, 1
    %499 = vsyncpa [#allocation11], 1
    %s500 = scalar_lea.sflag [#allocation11], 1
    %501 = vsyncpa %s500, 1

</llo_original>
